<compile_context>
chip_gen: v6e
topology: v6e:2x2x1
jax: 0.10.0
libtpu: 0.0.40
codegen_flags: <defaults>
</compile_context>

<pallas_src>
import jax
import jax.numpy as jnp
from jax import lax
from jax.experimental import pallas as pl
from jax.experimental.pallas import tpu as pltpu

_EPS = 1e-5
_LANES = 128


# ----------------------------------------------------------------------------
# Block-Toeplitz weight build (once, outside the jitted forward):
#   T[kh, (w+kw)*Cin + ci, w*Cout + co] = weight[co, ci, kh, kw]
# so that   conv_row(h) = sum_kh  x_row(h+kh) @ T[kh]
# with x_row(h) = padded input row h flattened to length (W+2)*Cin, then
# zero-padded on the K axis to k_pad lanes.
# TODO(synk): for large W/Cin/Cout, T is O(W^2*Cin*Cout) and only 3/(W+2)
# dense in K; tile the W (lane) axis with banded W-tiles of T so MXU FLOPs
# stay near the im2col minimum and T fits v7x's 64 MiB VMEM.
# ----------------------------------------------------------------------------
def build_toeplitz_weights(w_oihw, W, k_pad):
    Cout, Cin, KH, KW = w_oihw.shape
    w_hwio = jnp.transpose(w_oihw, (2, 3, 1, 0))  # (KH, KW, Cin, Cout)
    blocks = []
    for kh in range(KH):
        t = jnp.zeros(((W + KW - 1) * Cin, W * Cout), w_oihw.dtype)
        for kw in range(KW):
            # eye(W+KW-1, W, k=-kw) has a 1 at (w+kw, w)
            shift_eye = jnp.eye(W + KW - 1, W, k=-kw, dtype=w_oihw.dtype)
            t = t + jnp.kron(shift_eye, w_hwio[kh, kw])
        blocks.append(t)
    T = jnp.stack(blocks)  # (KH, (W+KW-1)*Cin, W*Cout)
    k = T.shape[1]
    return jnp.pad(T, ((0, 0), (0, k_pad - k), (0, 0)))


# ----------------------------------------------------------------------------
# Kernel: conv (3 Toeplitz matmuls over an Nb-element concatenated slab) plus
# per-grid-step channel sum / sum-of-squares for fused BN batch statistics.
# ----------------------------------------------------------------------------
def conv_bn_stats_kernel(x_ref, t_ref, y_ref, st_ref):
    # x_ref : (Nb, H+2, Kpad)   spatially padded, channels-last, K padded to 128
    # t_ref : (3, Kpad, W*Cout) block-Toeplitz weights (K rows >= 72 are zero)
    # y_ref : (Nb, H, W*Cout)   lane-dense conv output
    # st_ref: (1, 8, W*Cout)    row 0 = channel sums, row 1 = sums of squares
    Nb, H, WC = y_ref.shape

    # One concatenated LHS slab per tap: M = Nb*H rows per MXU matmul.
    # Row groups are loaded directly from the ref (offset vlds, no value-slice
    # sublane relayout before the MXU push).
    x0 = jnp.concatenate([x_ref[n, 0:H, :] for n in range(Nb)], axis=0)
    x1 = jnp.concatenate([x_ref[n, 1:H + 1, :] for n in range(Nb)], axis=0)
    x2 = jnp.concatenate([x_ref[n, 2:H + 2, :] for n in range(Nb)], axis=0)

    acc = jnp.dot(x0, t_ref[0], preferred_element_type=jnp.float32)
    acc = acc + jnp.dot(x1, t_ref[1], preferred_element_type=jnp.float32)
    acc = acc + jnp.dot(x2, t_ref[2], preferred_element_type=jnp.float32)
    # Conv bias intentionally omitted: it cancels exactly under train-mode BN.

    for n in range(Nb):                        # tile-aligned (H multiple of 8)
        y_ref[n] = acc[n * H:(n + 1) * H]

    s = jnp.sum(acc, axis=0, keepdims=True)          # (1, WC)
    ss = jnp.sum(acc * acc, axis=0, keepdims=True)   # (1, WC)
    st_ref[0] = jnp.concatenate(
        [s, ss, jnp.zeros((6, WC), jnp.float32)], axis=0)  # one dense store


def _choose_nb(N, H):
    # Collapse batch elements into each grid step to amortize the ~0.35 us
    # per-step overhead and raise MXU M.  Keep >= 2 'parallel' grid steps
    # (v7x has 2 TensorCores) once each step still gives the MXU >= 32 rows;
    # otherwise fully collapse (v5e/v6e are single-TC).
    if N % 2 == 0 and (N // 2) * H >= 32:
        return N // 2
    return N


def conv_bn_stats(xf, T, Nb):
    N, Hp2, Kpad = xf.shape
    H = Hp2 - 2
    WC = T.shape[2]
    gn = N // Nb
    # TODO(synk): add an H-tile grid axis with halo handling for images whose
    # (H+2) slab doesn't fit VMEM; size tiles for v7x's 64 MiB (32 MiB scoped)
    # and set vmem_limit_bytes explicitly when doing so.
    return pl.pallas_call(
        conv_bn_stats_kernel,
        out_shape=(
            jax.ShapeDtypeStruct((N, H, WC), jnp.float32),
            jax.ShapeDtypeStruct((gn, 8, WC), jnp.float32),
        ),
        grid=(gn,),
        in_specs=[
            pl.BlockSpec((Nb, Hp2, Kpad), lambda n: (n, 0, 0)),
            pl.BlockSpec((3, Kpad, WC), lambda n: (0, 0, 0)),
        ],
        out_specs=(
            pl.BlockSpec((Nb, H, WC), lambda n: (n, 0, 0)),
            pl.BlockSpec((1, 8, WC), lambda n: (n, 0, 0)),
        ),
        compiler_params=pltpu.CompilerParams(
            dimension_semantics=("parallel",)),
    )(xf, T)


# ----------------------------------------------------------------------------
# Full single_conv forward: NCHW in, NCHW out (matching PyTorch semantics).
# The conv bias is not an argument: under train-mode BatchNorm it cancels in
# (y - mean) and in the variance, so the output is bias-invariant.
# ----------------------------------------------------------------------------
@jax.jit
def single_conv_forward(x_nchw, T, gamma, beta):
    N, Cin, H, W = x_nchw.shape
    Kpad = T.shape[1]
    WC = T.shape[2]
    Cout = WC // W

    # NCHW -> spatially padded channels-last rows with K zero-padded to a full
    # 128-lane vreg width (unmasked full-lane loads into the MXU).
    x_nhwc = jnp.transpose(x_nchw, (0, 2, 3, 1))
    xp = jnp.pad(x_nhwc, ((0, 0), (1, 1), (1, 1), (0, 0)))
    xf = xp.reshape(N, H + 2, (W + 2) * Cin)
    xf = jnp.pad(xf, ((0, 0), (0, 0), (0, Kpad - (W + 2) * Cin)))

    Nb = _choose_nb(N, H)

    # Pass 1 (Pallas): conv + fused per-step channel sum / sum-of-squares.
    y, st = conv_bn_stats(xf, T, Nb)

    # Finalize train-mode BatchNorm batch statistics (biased variance).
    cnt = float(N * H * W)
    st_tot = st.sum(axis=0)                               # (8, WC)
    ch_sum = st_tot[0].reshape(W, Cout).sum(axis=0)
    ch_ssq = st_tot[1].reshape(W, Cout).sum(axis=0)
    mean = ch_sum / cnt
    # TODO(synk): E[x^2]-E[x]^2 can cancel catastrophically when |mean| >> std;
    # use a shifted / Welford accumulation for production scales.
    var = jnp.maximum(ch_ssq / cnt - mean * mean, 0.0)
    inv = lax.rsqrt(var + _EPS)
    scale = gamma * inv
    shift = beta - mean * scale

    # Pass 2: trivial memory-bound scale+shift+ReLU, done in plain XLA fused
    # with the layout restore (cheaper than a second pallas_call here).
    z = jnp.maximum(y.reshape(N, H, W, Cout) * scale + shift, 0.0)
    return jnp.transpose(z, (0, 3, 1, 2))                 # back to NCHW


# Pure-JAX reference for verification (includes the conv bias, proving it
# cancels under train-mode BN).
def reference_forward(x_nchw, w_oihw, bias, gamma, beta, eps=_EPS):
    y = lax.conv_general_dilated(
        x_nchw, w_oihw, window_strides=(1, 1), padding=((1, 1), (1, 1)),
        dimension_numbers=("NCHW", "OIHW", "NCHW"))
    y = y + bias[None, :, None, None]
    mean = jnp.mean(y, axis=(0, 2, 3), keepdims=True)
    var = jnp.mean((y - mean) ** 2, axis=(0, 2, 3), keepdims=True)
    yn = (y - mean) / jnp.sqrt(var + eps)
    yn = yn * gamma[None, :, None, None] + beta[None, :, None, None]
    return jnp.maximum(yn, 0.0)


if __name__ == "__main__":
    N, Cin, Cout, H, W = 2, 4, 8, 16, 16
    KPAD = pl.cdiv((W + 2) * Cin, _LANES) * _LANES   # 72 -> 128

    key = jax.random.PRNGKey(0)
    k_x, k_w, k_b = jax.random.split(key, 3)

    x = jax.random.normal(k_x, (N, Cin, H, W), dtype=jnp.float32)
    w = jax.random.normal(k_w, (Cout, Cin, 3, 3), dtype=jnp.float32) * 0.1
    b = jax.random.normal(k_b, (Cout,), dtype=jnp.float32) * 0.1
    gamma = jnp.ones((Cout,), dtype=jnp.float32)   # BatchNorm2d default weight
    beta = jnp.zeros((Cout,), dtype=jnp.float32)   # BatchNorm2d default bias

    # Toeplitz weights built once, outside the jitted forward (static weights).
    T = build_toeplitz_weights(w, W, KPAD).astype(jnp.float32)

    out = single_conv_forward(x, T, gamma, beta)
    out = jax.block_until_ready(out)

    ref = reference_forward(x, w, b, gamma, beta)
    assert out.shape == (N, Cout, H, W)
    assert jnp.allclose(out, ref, atol=1e-4, rtol=1e-4), "mismatch vs reference"

    print("KERNEL_OK")
</pallas_src>

<mosaic_0001>
module attributes {stable_mosaic.version = 11 : i64} {
  func.func @conv_bn_stats_kernel(%arg0: i32, %arg1: memref<2x18x128xf32, #tpu.memory_space<vmem>>, %arg2: memref<3x128x128xf32, #tpu.memory_space<vmem>>, %arg3: memref<2x16x128xf32, #tpu.memory_space<vmem>>, %arg4: memref<1x8x128xf32, #tpu.memory_space<vmem>>) attributes {dimension_semantics = [#tpu.dimension_semantics<parallel>], iteration_bounds = array<i64: 1>, scalar_prefetch = 0 : i64, scratch_operands = 0 : i64, tpu.core_type = #tpu.core_type<tc>, window_params = [{transform_indices = @transform_0, window_bounds = array<i64: 2, 18, 128>}, {pipeline_mode = #tpu.pipeline_mode<synchronous>, transform_indices = @transform_1, window_bounds = array<i64: 3, 128, 128>}, {transform_indices = @transform_2, window_bounds = array<i64: 2, 16, 128>}, {transform_indices = @transform_3, window_bounds = array<i64: 1, 8, 128>}]} {
    %c0 = arith.constant 0 : index
    %c0_0 = arith.constant 0 : index
    %c0_1 = arith.constant 0 : index
    %0 = vector.load %arg1[%c0, %c0_0, %c0_1] : memref<2x18x128xf32, #tpu.memory_space<vmem>>, vector<1x16x128xf32>
    %1 = vector.shape_cast %0 : vector<1x16x128xf32> to vector<16x128xf32>
    %c1 = arith.constant 1 : index
    %c0_2 = arith.constant 0 : index
    %c0_3 = arith.constant 0 : index
    %2 = vector.load %arg1[%c1, %c0_2, %c0_3] : memref<2x18x128xf32, #tpu.memory_space<vmem>>, vector<1x16x128xf32>
    %3 = vector.shape_cast %2 : vector<1x16x128xf32> to vector<16x128xf32>
    %4 = tpu.concatenate %1, %3 in 0 : vector<16x128xf32>, vector<16x128xf32> -> vector<32x128xf32>
    %c0_4 = arith.constant 0 : index
    %c1_5 = arith.constant 1 : index
    %c0_6 = arith.constant 0 : index
    %5 = vector.load %arg1[%c0_4, %c1_5, %c0_6] : memref<2x18x128xf32, #tpu.memory_space<vmem>>, vector<1x16x128xf32>
    %6 = vector.shape_cast %5 : vector<1x16x128xf32> to vector<16x128xf32>
    %c1_7 = arith.constant 1 : index
    %c1_8 = arith.constant 1 : index
    %c0_9 = arith.constant 0 : index
    %7 = vector.load %arg1[%c1_7, %c1_8, %c0_9] : memref<2x18x128xf32, #tpu.memory_space<vmem>>, vector<1x16x128xf32>
    %8 = vector.shape_cast %7 : vector<1x16x128xf32> to vector<16x128xf32>
    %9 = tpu.concatenate %6, %8 in 0 : vector<16x128xf32>, vector<16x128xf32> -> vector<32x128xf32>
    %c0_10 = arith.constant 0 : index
    %c2 = arith.constant 2 : index
    %c0_11 = arith.constant 0 : index
    %10 = vector.load %arg1[%c0_10, %c2, %c0_11] : memref<2x18x128xf32, #tpu.memory_space<vmem>>, vector<1x16x128xf32>
    %11 = vector.shape_cast %10 : vector<1x16x128xf32> to vector<16x128xf32>
    %c1_12 = arith.constant 1 : index
    %c2_13 = arith.constant 2 : index
    %c0_14 = arith.constant 0 : index
    %12 = vector.load %arg1[%c1_12, %c2_13, %c0_14] : memref<2x18x128xf32, #tpu.memory_space<vmem>>, vector<1x16x128xf32>
    %13 = vector.shape_cast %12 : vector<1x16x128xf32> to vector<16x128xf32>
    %14 = tpu.concatenate %11, %13 in 0 : vector<16x128xf32>, vector<16x128xf32> -> vector<32x128xf32>
    %c0_15 = arith.constant 0 : index
    %c0_16 = arith.constant 0 : index
    %c0_17 = arith.constant 0 : index
    %15 = vector.load %arg2[%c0_15, %c0_16, %c0_17] : memref<3x128x128xf32, #tpu.memory_space<vmem>>, vector<1x128x128xf32>
    %16 = vector.shape_cast %15 : vector<1x128x128xf32> to vector<128x128xf32>
    %cst = arith.constant dense<0.000000e+00> : vector<32x128xf32>
    %17 = tpu.matmul %4, %16, %cst {dimension_numbers = #tpu.dot_dimension_numbers<[1], [0], [0], [1], [0, 0, 1, 1], [], []>} : vector<32x128xf32>, vector<128x128xf32>, vector<32x128xf32> -> vector<32x128xf32>
    %c1_18 = arith.constant 1 : index
    %c0_19 = arith.constant 0 : index
    %c0_20 = arith.constant 0 : index
    %18 = vector.load %arg2[%c1_18, %c0_19, %c0_20] : memref<3x128x128xf32, #tpu.memory_space<vmem>>, vector<1x128x128xf32>
    %19 = vector.shape_cast %18 : vector<1x128x128xf32> to vector<128x128xf32>
    %cst_21 = arith.constant dense<0.000000e+00> : vector<32x128xf32>
    %20 = tpu.matmul %9, %19, %cst_21 {dimension_numbers = #tpu.dot_dimension_numbers<[1], [0], [0], [1], [0, 0, 1, 1], [], []>} : vector<32x128xf32>, vector<128x128xf32>, vector<32x128xf32> -> vector<32x128xf32>
    %21 = arith.addf %17, %20 : vector<32x128xf32>
    %c2_22 = arith.constant 2 : index
    %c0_23 = arith.constant 0 : index
    %c0_24 = arith.constant 0 : index
    %22 = vector.load %arg2[%c2_22, %c0_23, %c0_24] : memref<3x128x128xf32, #tpu.memory_space<vmem>>, vector<1x128x128xf32>
    %23 = vector.shape_cast %22 : vector<1x128x128xf32> to vector<128x128xf32>
    %cst_25 = arith.constant dense<0.000000e+00> : vector<32x128xf32>
    %24 = tpu.matmul %14, %23, %cst_25 {dimension_numbers = #tpu.dot_dimension_numbers<[1], [0], [0], [1], [0, 0, 1, 1], [], []>} : vector<32x128xf32>, vector<128x128xf32>, vector<32x128xf32> -> vector<32x128xf32>
    %25 = arith.addf %21, %24 : vector<32x128xf32>
    %26 = vector.extract_strided_slice %25 {offsets = [0, 0], sizes = [16, 128], strides = [1, 1]} : vector<32x128xf32> to vector<16x128xf32>
    %c0_26 = arith.constant 0 : index
    %c0_27 = arith.constant 0 : index
    %c0_28 = arith.constant 0 : index
    %27 = vector.load %arg3[%c0_26, %c0_27, %c0_28] : memref<2x16x128xf32, #tpu.memory_space<vmem>>, vector<1x16x128xf32>
    %28 = vector.shape_cast %27 : vector<1x16x128xf32> to vector<16x128xf32>
    %29 = vector.shape_cast %26 : vector<16x128xf32> to vector<1x16x128xf32>
    tpu.vector_store %arg3[%c0_26, %c0_27, %c0_28], %29 {strides = array<i32>} : memref<2x16x128xf32, #tpu.memory_space<vmem>>, vector<1x16x128xf32>,
    %30 = vector.extract_strided_slice %25 {offsets = [16, 0], sizes = [16, 128], strides = [1, 1]} : vector<32x128xf32> to vector<16x128xf32>
    %c1_29 = arith.constant 1 : index
    %c0_30 = arith.constant 0 : index
    %c0_31 = arith.constant 0 : index
    %31 = vector.load %arg3[%c1_29, %c0_30, %c0_31] : memref<2x16x128xf32, #tpu.memory_space<vmem>>, vector<1x16x128xf32>
    %32 = vector.shape_cast %31 : vector<1x16x128xf32> to vector<16x128xf32>
    %33 = vector.shape_cast %30 : vector<16x128xf32> to vector<1x16x128xf32>
    tpu.vector_store %arg3[%c1_29, %c0_30, %c0_31], %33 {strides = array<i32>} : memref<2x16x128xf32, #tpu.memory_space<vmem>>, vector<1x16x128xf32>,
    %cst_32 = arith.constant dense<0.000000e+00> : vector<128xf32>
    %34 = vector.multi_reduction <add>, %25, %cst_32 [0] : vector<32x128xf32> to vector<128xf32>
    %35 = vector.shape_cast %34 : vector<128xf32> to vector<1x128xf32>
    %36 = arith.mulf %25, %25 : vector<32x128xf32>
    %cst_33 = arith.constant dense<0.000000e+00> : vector<128xf32>
    %37 = vector.multi_reduction <add>, %36, %cst_33 [0] : vector<32x128xf32> to vector<128xf32>
    %38 = vector.shape_cast %37 : vector<128xf32> to vector<1x128xf32>
    %cst_34 = arith.constant 0.000000e+00 : f32
    %39 = vector.broadcast %cst_34 : f32 to vector<6x128xf32>
    %40 = tpu.concatenate %35, %38, %39 in 0 : vector<1x128xf32>, vector<1x128xf32>, vector<6x128xf32> -> vector<8x128xf32>
    %c0_35 = arith.constant 0 : index
    %c0_36 = arith.constant 0 : index
    %c0_37 = arith.constant 0 : index
    %41 = vector.load %arg4[%c0_35, %c0_36, %c0_37] : memref<1x8x128xf32, #tpu.memory_space<vmem>>, vector<1x8x128xf32>
    %42 = vector.shape_cast %41 : vector<1x8x128xf32> to vector<8x128xf32>
    %43 = vector.shape_cast %40 : vector<8x128xf32> to vector<1x8x128xf32>
    tpu.vector_store %arg4[%c0_35, %c0_36, %c0_37], %43 {strides = array<i32>} : memref<1x8x128xf32, #tpu.memory_space<vmem>>, vector<1x8x128xf32>,
    return
  }
  func.func @transform_0(%arg0: i32) -> (i32, i32, i32) {
    %c0_i32 = arith.constant 0 : i32
    %c0_i32_0 = arith.constant 0 : i32
    %c0_i32_1 = arith.constant 0 : i32
    return %arg0, %c0_i32, %c0_i32_0 : i32, i32, i32
  }
  func.func @transform_1(%arg0: i32) -> (i32, i32, i32) {
    %c0_i32 = arith.constant 0 : i32
    %c0_i32_0 = arith.constant 0 : i32
    %c0_i32_1 = arith.constant 0 : i32
    %c0_i32_2 = arith.constant 0 : i32
    return %c0_i32, %c0_i32_0, %c0_i32_1 : i32, i32, i32
  }
  func.func @transform_2(%arg0: i32) -> (i32, i32, i32) {
    %c0_i32 = arith.constant 0 : i32
    %c0_i32_0 = arith.constant 0 : i32
    %c0_i32_1 = arith.constant 0 : i32
    return %arg0, %c0_i32, %c0_i32_0 : i32, i32, i32
  }
  func.func @transform_3(%arg0: i32) -> (i32, i32, i32) {
    %c0_i32 = arith.constant 0 : i32
    %c0_i32_0 = arith.constant 0 : i32
    %c0_i32_1 = arith.constant 0 : i32
    return %arg0, %c0_i32, %c0_i32_0 : i32, i32, i32
  }
}

</mosaic_0001>

<llo_original>
// kernel: squeeze.2
$region0: #{squeeze.2}
  %s0 = inlined_call_operand.vmem [shape: f32[128], index: 0, kind: input, shape index: {}]
  %s1 = inlined_call_operand.vmem [shape: f32[16,8], index: 1, kind: output, shape index: {}]
  $region1: #{squeeze.2} parent=0
    #allocation0 [shape = 'u8[4096]{0}', space=vmem, size = 0x1000, scoped, tag = 'scoped mem for input reshape']
    %s3 = sshll.u32 1, 1
    %s4 = ssub.s32 %s3, 1
    %v5 = vld [vmem:[%s0] sm:%s4]
    %6 = vst [vmem:[#allocation0] sm:%s4] %v5
    %v7 = vld [vmem:[#allocation0] sm:$0x1]
    %vm8 = vcmask 64512
    %9 = vst.msk [vmem:[%s1] sm:$0x1] %vm8, %v7
    %v10 = vld [vmem:[#allocation0] sm:$0x1]
    %11 = vrot.lane.b32.xlu0 %v10, 120
    %v12 = vpop.permute.xlu0 %11
    %vm13 = vcmask 64512
    %s14 = scalar_lea.vmem %s1, 1
    %15 = vst.msk [vmem:[%s14] sm:$0x1] %vm13, %v12
    %v16 = vld [vmem:[#allocation0] sm:$0x1]
    %17 = vrot.lane.b32.xlu0 %v16, 112
    %v18 = vpop.permute.xlu0 %17
    %vm19 = vcmask 64512
    %s20 = scalar_lea.vmem %s1, 2
    %21 = vst.msk [vmem:[%s20] sm:$0x1] %vm19, %v18
    %v22 = vld [vmem:[#allocation0] sm:$0x1]
    %23 = vrot.lane.b32.xlu0 %v22, 104
    %v24 = vpop.permute.xlu0 %23
    %vm25 = vcmask 64512
    %s26 = scalar_lea.vmem %s1, 3
    %27 = vst.msk [vmem:[%s26] sm:$0x1] %vm25, %v24
    %v28 = vld [vmem:[#allocation0] sm:$0x1]
    %29 = vrot.lane.b32.xlu0 %v28, 96
    %v30 = vpop.permute.xlu0 %29
    %vm31 = vcmask 64512
    %s32 = scalar_lea.vmem %s1, 4
    %33 = vst.msk [vmem:[%s32] sm:$0x1] %vm31, %v30
    %v34 = vld [vmem:[#allocation0] sm:$0x1]
    %35 = vrot.lane.b32.xlu0 %v34, 88
    %v36 = vpop.permute.xlu0 %35
    %vm37 = vcmask 64512
    %s38 = scalar_lea.vmem %s1, 5
    %39 = vst.msk [vmem:[%s38] sm:$0x1] %vm37, %v36
    %v40 = vld [vmem:[#allocation0] sm:$0x1]
    %41 = vrot.lane.b32.xlu0 %v40, 80
    %v42 = vpop.permute.xlu0 %41
    %vm43 = vcmask 64512
    %s44 = scalar_lea.vmem %s1, 6
    %45 = vst.msk [vmem:[%s44] sm:$0x1] %vm43, %v42
    %v46 = vld [vmem:[#allocation0] sm:$0x1]
    %47 = vrot.lane.b32.xlu0 %v46, 72
    %v48 = vpop.permute.xlu0 %47
    %vm49 = vcmask 64512
    %s50 = scalar_lea.vmem %s1, 7
    %51 = vst.msk [vmem:[%s50] sm:$0x1] %vm49, %v48
    %v52 = vld [vmem:[#allocation0] sm:$0x1]
    %53 = vrot.lane.b32.xlu0 %v52, 64
    %v54 = vpop.permute.xlu0 %53
    %vm55 = vcmask 64512
    %s56 = scalar_lea.vmem %s1, 8
    %57 = vst.msk [vmem:[%s56] sm:$0x1] %vm55, %v54
    %v58 = vld [vmem:[#allocation0] sm:$0x1]
    %59 = vrot.lane.b32.xlu0 %v58, 56
    %v60 = vpop.permute.xlu0 %59
    %vm61 = vcmask 64512
    %s62 = scalar_lea.vmem %s1, 9
    %63 = vst.msk [vmem:[%s62] sm:$0x1] %vm61, %v60
    %v64 = vld [vmem:[#allocation0] sm:$0x1]
    %65 = vrot.lane.b32.xlu0 %v64, 48
    %v66 = vpop.permute.xlu0 %65
    %vm67 = vcmask 64512
    %s68 = scalar_lea.vmem %s1, 10
    %69 = vst.msk [vmem:[%s68] sm:$0x1] %vm67, %v66
    %v70 = vld [vmem:[#allocation0] sm:$0x1]
    %71 = vrot.lane.b32.xlu0 %v70, 40
    %v72 = vpop.permute.xlu0 %71
    %vm73 = vcmask 64512
    %s74 = scalar_lea.vmem %s1, 11
    %75 = vst.msk [vmem:[%s74] sm:$0x1] %vm73, %v72
    %v76 = vld [vmem:[#allocation0] sm:$0x1]
    %77 = vrot.lane.b32.xlu0 %v76, 32
    %v78 = vpop.permute.xlu0 %77
    %vm79 = vcmask 64512
    %s80 = scalar_lea.vmem %s1, 12
    %81 = vst.msk [vmem:[%s80] sm:$0x1] %vm79, %v78
    %v82 = vld [vmem:[#allocation0] sm:$0x1]
    %83 = vrot.lane.b32.xlu0 %v82, 24
    %v84 = vpop.permute.xlu0 %83
    %vm85 = vcmask 64512
    %s86 = scalar_lea.vmem %s1, 13
    %87 = vst.msk [vmem:[%s86] sm:$0x1] %vm85, %v84
    %v88 = vld [vmem:[#allocation0] sm:$0x1]
    %89 = vrot.lane.b32.xlu0 %v88, 16
    %v90 = vpop.permute.xlu0 %89
    %vm91 = vcmask 64512
    %s92 = scalar_lea.vmem %s1, 14
    %93 = vst.msk [vmem:[%s92] sm:$0x1] %vm91, %v90
    %v94 = vld [vmem:[#allocation0] sm:$0x1]
    %95 = vrot.lane.b32.xlu0 %v94, 8
    %v96 = vpop.permute.xlu0 %95
    %vm97 = vcmask 64512
    %s98 = scalar_lea.vmem %s1, 15
    %99 = vst.msk [vmem:[%s98] sm:$0x1] %vm97, %v96

// kernel: single_conv_forward.1
$region0: #{single_conv_forward.1}
  #allocation0 [shape = 'u32[]', space=smem, size = 0x4, offset = 0x4, fixed_abs, tag = 'smem constant byte address 0x4 - core index']
  #allocation1 [shape = 'u32[144,128]{1,0:T(1,128)}', space=vmem, size = 0x12000, scoped, tag = 'internal scratch']
  %s0 = inlined_call_operand.vmem [shape: f32[2,18,128], index: 0, kind: input, shape index: {}]
  %s1 = inlined_call_operand.vmem [shape: f32[3,128,128], index: 1, kind: input, shape index: {}]
  %s2 = inlined_call_operand.vmem [shape: f32[2,16,128], index: 2, kind: output, shape index: {0}]
  %s3 = inlined_call_operand.vmem [shape: f32[1,8,128], index: 3, kind: output, shape index: {1}]
  %4 = xla_tuple %s2, %s3
  %s5 = sld [smem:[#allocation0]]
  $region26: #{single_conv_forward.1} parent=0
    _
  %s7 = ssub.s32 1, %s5
  %s8 = scalar_select 0, %s7, %s5
  // Predicated region
  $region2: #{single_conv_forward.1} parent=0 // pred_check
    _
  $region3: #{single_conv_forward.1} parent=0 // pred_check_branch
    %10 = sbr.rel (0) target = $region5
  $region4: #{single_conv_forward.1} parent=0 // pred_region
    _
  $region5: #{single_conv_forward.1} parent=0 // pred_fallthru
    _
  // Predicated region
  $region6: #{single_conv_forward.1} parent=0 // pred_check
    _
  $region7: #{single_conv_forward.1} parent=0 // pred_check_branch
    %12 = sbr.rel (0) target = $region9
  $region8: #{single_conv_forward.1} parent=0 // pred_region
    _
  $region9: #{single_conv_forward.1} parent=0 // pred_fallthru
    _
  %v13 = vld [vmem:[%s0] sm:$0xff]
  %v14 = vld [vmem:[%s0 + $0x8] sm:$0xff]
  %s15 = scalar_lea.vmem %s0, 24
  %v16 = vld [vmem:[%s15] sm:$0xff]
  %v17 = vld [vmem:[%s15 + $0x8] sm:$0xff]
  %v18 = vld [vmem:[%s0 + $0x1] sm:$0xff]
  %v19 = vld [vmem:[%s0 + $0x9] sm:$0xff]
  %v20 = vld [vmem:[%s15 + $0x1] sm:$0xff]
  %v21 = vld [vmem:[%s15 + $0x9] sm:$0xff]
  %v22 = vld [vmem:[%s0 + $0x2] sm:$0xff]
  %v23 = vld [vmem:[%s0 + $0xa] sm:$0xff]
  %v24 = vld [vmem:[%s15 + $0x2] sm:$0xff]
  %v25 = vld [vmem:[%s15 + $0xa] sm:$0xff]
  %v26 = vld [vmem:[%s1] sm:$0xff]
  %v27 = vld [vmem:[%s1 + $0x8] sm:$0xff]
  %v28 = vld [vmem:[%s1 + $0x10] sm:$0xff]
  %v29 = vld [vmem:[%s1 + $0x18] sm:$0xff]
  %v30 = vld [vmem:[%s1 + $0x20] sm:$0xff]
  %v31 = vld [vmem:[%s1 + $0x28] sm:$0xff]
  %v32 = vld [vmem:[%s1 + $0x30] sm:$0xff]
  %v33 = vld [vmem:[%s1 + $0x38] sm:$0xff]
  %v34 = vld [vmem:[%s1 + $0x40] sm:$0xff]
  %v35 = vld [vmem:[%s1 + $0x48] sm:$0xff]
  %v36 = vld [vmem:[%s1 + $0x50] sm:$0xff]
  %v37 = vld [vmem:[%s1 + $0x58] sm:$0xff]
  %v38 = vld [vmem:[%s1 + $0x60] sm:$0xff]
  %v39 = vld [vmem:[%s1 + $0x68] sm:$0xff]
  %v40 = vld [vmem:[%s1 + $0x70] sm:$0xff]
  %v41 = vld [vmem:[%s1 + $0x78] sm:$0xff]
  %s42 = scalar_lea.vmem %s1, 128
  %v43 = vld [vmem:[%s42] sm:$0xff]
  %v44 = vld [vmem:[%s42 + $0x8] sm:$0xff]
  %v45 = vld [vmem:[%s42 + $0x10] sm:$0xff]
  %v46 = vld [vmem:[%s42 + $0x18] sm:$0xff]
  %v47 = vld [vmem:[%s42 + $0x20] sm:$0xff]
  %v48 = vld [vmem:[%s42 + $0x28] sm:$0xff]
  %v49 = vld [vmem:[%s42 + $0x30] sm:$0xff]
  %v50 = vld [vmem:[%s42 + $0x38] sm:$0xff]
  %v51 = vld [vmem:[%s42 + $0x40] sm:$0xff]
  %v52 = vld [vmem:[%s42 + $0x48] sm:$0xff]
  %v53 = vld [vmem:[%s42 + $0x50] sm:$0xff]
  %v54 = vld [vmem:[%s42 + $0x58] sm:$0xff]
  %v55 = vld [vmem:[%s42 + $0x60] sm:$0xff]
  %v56 = vld [vmem:[%s42 + $0x68] sm:$0xff]
  %v57 = vld [vmem:[%s42 + $0x70] sm:$0xff]
  %v58 = vld [vmem:[%s42 + $0x78] sm:$0xff]
  %59 = vmatprep.subr.mxu0 0.0
  %60 = vmatpush1.msra.mxu0 %v58
  %61 = vmatprep.subr.mxu0 0.0
  %62 = vmatpush1.msra.mxu0 %v57
  %63 = vmatprep.subr.mxu0 0.0
  %64 = vmatpush1.msra.mxu0 %v56
  %65 = vmatprep.subr.mxu0 0.0
  %66 = vmatpush1.msra.mxu0 %v55
  %67 = vmatprep.subr.mxu0 0.0
  %68 = vmatpush1.msra.mxu0 %v54
  %69 = vmatprep.subr.mxu0 0.0
  %70 = vmatpush1.msra.mxu0 %v53
  %71 = vmatprep.subr.mxu0 0.0
  %72 = vmatpush1.msra.mxu0 %v52
  %73 = vmatprep.subr.mxu0 0.0
  %74 = vmatpush1.msra.mxu0 %v51
  %75 = vmatprep.subr.mxu0 0.0
  %76 = vmatpush1.msra.mxu0 %v50
  %77 = vmatprep.subr.mxu0 0.0
  %78 = vmatpush1.msra.mxu0 %v49
  %79 = vmatprep.subr.mxu0 0.0
  %80 = vmatpush1.msra.mxu0 %v48
  %81 = vmatprep.subr.mxu0 0.0
  %82 = vmatpush1.msra.mxu0 %v47
  %83 = vmatprep.subr.mxu0 0.0
  %84 = vmatpush1.msra.mxu0 %v46
  %85 = vmatprep.subr.mxu0 0.0
  %86 = vmatpush1.msra.mxu0 %v45
  %87 = vmatprep.subr.mxu0 0.0
  %88 = vmatpush1.msra.mxu0 %v44
  %89 = vmatprep.subr.mxu0 0.0
  %90 = vmatpush1.msra.mxu0 %v43
  %91 = vmatprep.subr.mxu0 0.0
  %92 = vmatpush2.msra.mxu0 0.0
  %93 = vmatprep.subr.mxu0 0.0
  %94 = vmatpush2.msra.mxu0 0.0
  %95 = vmatprep.subr.mxu0 0.0
  %96 = vmatpush2.msra.mxu0 0.0
  %97 = vmatprep.subr.mxu0 0.0
  %98 = vmatpush2.msra.mxu0 0.0
  %99 = vmatprep.subr.mxu0 0.0
  %100 = vmatpush2.msra.mxu0 0.0
  %101 = vmatprep.subr.mxu0 0.0
  %102 = vmatpush2.msra.mxu0 0.0
  %103 = vmatprep.subr.mxu0 0.0
  %104 = vmatpush2.msra.mxu0 0.0
  %105 = vmatprep.subr.mxu0 0.0
  %106 = vmatpush2.msra.mxu0 0.0
  %107 = vmatprep.subr.mxu0 0.0
  %108 = vmatpush2.msra.mxu0 0.0
  %109 = vmatprep.subr.mxu0 0.0
  %110 = vmatpush2.msra.mxu0 0.0
  %111 = vmatprep.subr.mxu0 0.0
  %112 = vmatpush2.msra.mxu0 0.0
  %113 = vmatprep.subr.mxu0 0.0
  %114 = vmatpush2.msra.mxu0 0.0
  %115 = vmatprep.subr.mxu0 0.0
  %116 = vmatpush2.msra.mxu0 0.0
  %117 = vmatprep.subr.mxu0 0.0
  %118 = vmatpush2.msra.mxu0 0.0
  %119 = vmatprep.subr.mxu0 0.0
  %120 = vmatpush2.msra.mxu0 0.0
  %121 = vmatprep.subr.mxu0 0.0
  %122 = vmatpush2.msra.mxu0 0.0
  %123 = vmatprep.mubr.f32.mxu0 0.0
  %124 = vmatmul.mubr.f32.gmra.mxu0 %v18
  %v125 = vpop.f32.mrf.mxu0
  %v126 = vadd.f32 0.0, %v125
  %v127 = vpop.f32.mrf.mxu0
  %128 = vmatprep.mubr.f32.mxu0 0.0
  %129 = vmatmul.mubr.f32.gmra.mxu0 %v19
  %v130 = vpop.f32.mrf.mxu0
  %v131 = vadd.f32 0.0, %v130
  %v132 = vpop.f32.mrf.mxu0
  %133 = vmatprep.mubr.f32.mxu0 0.0
  %134 = vmatmul.mubr.f32.gmra.mxu0 %v20
  %v135 = vpop.f32.mrf.mxu0
  %v136 = vadd.f32 0.0, %v135
  %v137 = vpop.f32.mrf.mxu0
  %138 = vmatprep.mubr.f32.mxu0 0.0
  %139 = vmatmul.mubr.f32.gmra.mxu0 %v21
  %v140 = vpop.f32.mrf.mxu0
  %v141 = vadd.f32 0.0, %v140
  %v142 = vpop.f32.mrf.mxu0
  %143 = vdwg.mxu0
  %144 = vmatprep.subr.mxu0 0.0
  %145 = vmatpush1.msra.mxu0 %v41
  %146 = vmatprep.subr.mxu0 0.0
  %147 = vmatpush1.msra.mxu0 %v40
  %148 = vmatprep.subr.mxu0 0.0
  %149 = vmatpush1.msra.mxu0 %v39
  %150 = vmatprep.subr.mxu0 0.0
  %151 = vmatpush1.msra.mxu0 %v38
  %152 = vmatprep.subr.mxu0 0.0
  %153 = vmatpush1.msra.mxu0 %v37
  %154 = vmatprep.subr.mxu0 0.0
  %155 = vmatpush1.msra.mxu0 %v36
  %156 = vmatprep.subr.mxu0 0.0
  %157 = vmatpush1.msra.mxu0 %v35
  %158 = vmatprep.subr.mxu0 0.0
  %159 = vmatpush1.msra.mxu0 %v34
  %160 = vmatprep.subr.mxu0 0.0
  %161 = vmatpush1.msra.mxu0 %v33
  %162 = vmatprep.subr.mxu0 0.0
  %163 = vmatpush1.msra.mxu0 %v32
  %164 = vmatprep.subr.mxu0 0.0
  %165 = vmatpush1.msra.mxu0 %v31
  %166 = vmatprep.subr.mxu0 0.0
  %167 = vmatpush1.msra.mxu0 %v30
  %168 = vmatprep.subr.mxu0 0.0
  %169 = vmatpush1.msra.mxu0 %v29
  %170 = vmatprep.subr.mxu0 0.0
  %171 = vmatpush1.msra.mxu0 %v28
  %172 = vmatprep.subr.mxu0 0.0
  %173 = vmatpush1.msra.mxu0 %v27
  %174 = vmatprep.subr.mxu0 0.0
  %175 = vmatpush1.msra.mxu0 %v26
  %176 = vmatprep.subr.mxu0 0.0
  %177 = vmatpush2.msra.mxu0 0.0
  %178 = vmatprep.subr.mxu0 0.0
  %179 = vmatpush2.msra.mxu0 0.0
  %180 = vmatprep.subr.mxu0 0.0
  %181 = vmatpush2.msra.mxu0 0.0
  %182 = vmatprep.subr.mxu0 0.0
  %183 = vmatpush2.msra.mxu0 0.0
  %184 = vmatprep.subr.mxu0 0.0
  %185 = vmatpush2.msra.mxu0 0.0
  %186 = vmatprep.subr.mxu0 0.0
  %187 = vmatpush2.msra.mxu0 0.0
  %188 = vmatprep.subr.mxu0 0.0
  %189 = vmatpush2.msra.mxu0 0.0
  %190 = vmatprep.subr.mxu0 0.0
  %191 = vmatpush2.msra.mxu0 0.0
  %192 = vmatprep.subr.mxu0 0.0
  %193 = vmatpush2.msra.mxu0 0.0
  %194 = vmatprep.subr.mxu0 0.0
  %195 = vmatpush2.msra.mxu0 0.0
  %196 = vmatprep.subr.mxu0 0.0
  %197 = vmatpush2.msra.mxu0 0.0
  %198 = vmatprep.subr.mxu0 0.0
  %199 = vmatpush2.msra.mxu0 0.0
  %200 = vmatprep.subr.mxu0 0.0
  %201 = vmatpush2.msra.mxu0 0.0
  %202 = vmatprep.subr.mxu0 0.0
  %203 = vmatpush2.msra.mxu0 0.0
  %204 = vmatprep.subr.mxu0 0.0
  %205 = vmatpush2.msra.mxu0 0.0
  %206 = vmatprep.subr.mxu0 0.0
  %207 = vmatpush2.msra.mxu0 0.0
  %208 = vmatprep.mubr.f32.mxu0 0.0
  %209 = vmatmul.mubr.f32.gmra.mxu0 %v13
  %v210 = vpop.f32.mrf.mxu0
  %v211 = vadd.f32 %v126, %v210
  %v212 = vpop.f32.mrf.mxu0
  %213 = vmatprep.mubr.f32.mxu0 0.0
  %214 = vmatmul.mubr.f32.gmra.mxu0 %v14
  %v215 = vpop.f32.mrf.mxu0
  %v216 = vadd.f32 %v131, %v215
  %v217 = vpop.f32.mrf.mxu0
  %218 = vmatprep.mubr.f32.mxu0 0.0
  %219 = vmatmul.mubr.f32.gmra.mxu0 %v16
  %v220 = vpop.f32.mrf.mxu0
  %v221 = vadd.f32 %v136, %v220
  %v222 = vpop.f32.mrf.mxu0
  %223 = vmatprep.mubr.f32.mxu0 0.0
  %224 = vmatmul.mubr.f32.gmra.mxu0 %v17
  %v225 = vpop.f32.mrf.mxu0
  %v226 = vadd.f32 %v141, %v225
  %v227 = vpop.f32.mrf.mxu0
  %228 = vdwg.mxu0
  %s229 = scalar_lea.vmem %s1, 256
  %v230 = vld [vmem:[%s229] sm:$0xff]
  %v231 = vld [vmem:[%s229 + $0x8] sm:$0xff]
  %v232 = vld [vmem:[%s229 + $0x10] sm:$0xff]
  %v233 = vld [vmem:[%s229 + $0x18] sm:$0xff]
  %v234 = vld [vmem:[%s229 + $0x20] sm:$0xff]
  %v235 = vld [vmem:[%s229 + $0x28] sm:$0xff]
  %v236 = vld [vmem:[%s229 + $0x30] sm:$0xff]
  %v237 = vld [vmem:[%s229 + $0x38] sm:$0xff]
  %v238 = vld [vmem:[%s229 + $0x40] sm:$0xff]
  %v239 = vld [vmem:[%s229 + $0x48] sm:$0xff]
  %v240 = vld [vmem:[%s229 + $0x50] sm:$0xff]
  %v241 = vld [vmem:[%s229 + $0x58] sm:$0xff]
  %v242 = vld [vmem:[%s229 + $0x60] sm:$0xff]
  %v243 = vld [vmem:[%s229 + $0x68] sm:$0xff]
  %v244 = vld [vmem:[%s229 + $0x70] sm:$0xff]
  %v245 = vld [vmem:[%s229 + $0x78] sm:$0xff]
  %246 = vmatprep.subr.mxu0 0.0
  %247 = vmatpush1.msra.mxu0 %v245
  %248 = vmatprep.subr.mxu0 0.0
  %249 = vmatpush1.msra.mxu0 %v244
  %250 = vmatprep.subr.mxu0 0.0
  %251 = vmatpush1.msra.mxu0 %v243
  %252 = vmatprep.subr.mxu0 0.0
  %253 = vmatpush1.msra.mxu0 %v242
  %254 = vmatprep.subr.mxu0 0.0
  %255 = vmatpush1.msra.mxu0 %v241
  %256 = vmatprep.subr.mxu0 0.0
  %257 = vmatpush1.msra.mxu0 %v240
  %258 = vmatprep.subr.mxu0 0.0
  %259 = vmatpush1.msra.mxu0 %v239
  %260 = vmatprep.subr.mxu0 0.0
  %261 = vmatpush1.msra.mxu0 %v238
  %262 = vmatprep.subr.mxu0 0.0
  %263 = vmatpush1.msra.mxu0 %v237
  %264 = vmatprep.subr.mxu0 0.0
  %265 = vmatpush1.msra.mxu0 %v236
  %266 = vmatprep.subr.mxu0 0.0
  %267 = vmatpush1.msra.mxu0 %v235
  %268 = vmatprep.subr.mxu0 0.0
  %269 = vmatpush1.msra.mxu0 %v234
  %270 = vmatprep.subr.mxu0 0.0
  %271 = vmatpush1.msra.mxu0 %v233
  %272 = vmatprep.subr.mxu0 0.0
  %273 = vmatpush1.msra.mxu0 %v232
  %274 = vmatprep.subr.mxu0 0.0
  %275 = vmatpush1.msra.mxu0 %v231
  %276 = vmatprep.subr.mxu0 0.0
  %277 = vmatpush1.msra.mxu0 %v230
  %278 = vmatprep.subr.mxu0 0.0
  %279 = vmatpush2.msra.mxu0 0.0
  %280 = vmatprep.subr.mxu0 0.0
  %281 = vmatpush2.msra.mxu0 0.0
  %282 = vmatprep.subr.mxu0 0.0
  %283 = vmatpush2.msra.mxu0 0.0
  %284 = vmatprep.subr.mxu0 0.0
  %285 = vmatpush2.msra.mxu0 0.0
  %286 = vmatprep.subr.mxu0 0.0
  %287 = vmatpush2.msra.mxu0 0.0
  %288 = vmatprep.subr.mxu0 0.0
  %289 = vmatpush2.msra.mxu0 0.0
  %290 = vmatprep.subr.mxu0 0.0
  %291 = vmatpush2.msra.mxu0 0.0
  %292 = vmatprep.subr.mxu0 0.0
  %293 = vmatpush2.msra.mxu0 0.0
  %294 = vmatprep.subr.mxu0 0.0
  %295 = vmatpush2.msra.mxu0 0.0
  %296 = vmatprep.subr.mxu0 0.0
  %297 = vmatpush2.msra.mxu0 0.0
  %298 = vmatprep.subr.mxu0 0.0
  %299 = vmatpush2.msra.mxu0 0.0
  %300 = vmatprep.subr.mxu0 0.0
  %301 = vmatpush2.msra.mxu0 0.0
  %302 = vmatprep.subr.mxu0 0.0
  %303 = vmatpush2.msra.mxu0 0.0
  %304 = vmatprep.subr.mxu0 0.0
  %305 = vmatpush2.msra.mxu0 0.0
  %306 = vmatprep.subr.mxu0 0.0
  %307 = vmatpush2.msra.mxu0 0.0
  %308 = vmatprep.subr.mxu0 0.0
  %309 = vmatpush2.msra.mxu0 0.0
  %310 = vmatprep.mubr.f32.mxu0 0.0
  %311 = vmatmul.mubr.f32.gmra.mxu0 %v22
  %v312 = vpop.f32.mrf.mxu0
  %v313 = vadd.f32 0.0, %v312
  %v314 = vpop.f32.mrf.mxu0
  %315 = vmatprep.mubr.f32.mxu0 0.0
  %316 = vmatmul.mubr.f32.gmra.mxu0 %v23
  %v317 = vpop.f32.mrf.mxu0
  %v318 = vadd.f32 0.0, %v317
  %v319 = vpop.f32.mrf.mxu0
  %320 = vmatprep.mubr.f32.mxu0 0.0
  %321 = vmatmul.mubr.f32.gmra.mxu0 %v24
  %v322 = vpop.f32.mrf.mxu0
  %v323 = vadd.f32 0.0, %v322
  %v324 = vpop.f32.mrf.mxu0
  %325 = vmatprep.mubr.f32.mxu0 0.0
  %326 = vmatmul.mubr.f32.gmra.mxu0 %v25
  %v327 = vpop.f32.mrf.mxu0
  %v328 = vadd.f32 0.0, %v327
  %v329 = vpop.f32.mrf.mxu0
  %330 = vdwg.mxu0
  %v331 = vadd.f32 %v211, %v313
  %v332 = vadd.f32 %v216, %v318
  %v333 = vadd.f32 %v221, %v323
  %v334 = vadd.f32 %v226, %v328
  %335 = vst [vmem:[%s2] sm:$0xff] %v331
  %336 = vst [vmem:[%s2 + $0x8] sm:$0xff] %v332
  %s337 = scalar_lea.vmem %s2, 16
  %338 = vst [vmem:[%s337] sm:$0xff] %v333
  %339 = vst [vmem:[%s337 + $0x8] sm:$0xff] %v334
  %v340 = vadd.f32 %v331, %v332
  %v341 = vadd.f32 %v340, %v333
  %v342 = vadd.f32 %v341, %v334
  %v343 = vrot.slane %v342, 4
  %v344 = vadd.f32 %v342, %v343
  %v345 = vrot.slane %v344, 2
  %v346 = vadd.f32 %v344, %v345
  %v347 = vrot.slane %v346, 1
  %v348 = vadd.f32 %v346, %v347
  %v349 = vmul.f32 %v331, %v331
  %v350 = vmul.f32 %v332, %v332
  %v351 = vmul.f32 %v333, %v333
  %v352 = vmul.f32 %v334, %v334
  %v353 = vadd.f32 %v349, %v350
  %v354 = vadd.f32 %v353, %v351
  %v355 = vadd.f32 %v354, %v352
  %v356 = vrot.slane %v355, 4
  %v357 = vadd.f32 %v355, %v356
  %v358 = vrot.slane %v357, 2
  %v359 = vadd.f32 %v357, %v358
  %v360 = vrot.slane %v359, 1
  %v361 = vadd.f32 %v359, %v360
  %vm362 = vcmask 1040384
  %v363 = vsel %vm362, %v348, %v361
  %vm364 = vcmask 1041408
  %v365 = vsel %vm364, %v363, 0.0
  %366 = vst [vmem:[%s3] sm:$0xff] %v365
  // Predicated region
  $region10: #{single_conv_forward.1} parent=0 // pred_check
    _
  $region11: #{single_conv_forward.1} parent=0 // pred_check_branch
    %368 = sbr.rel (0) target = $region13
  $region12: #{single_conv_forward.1} parent=0 // pred_region
    _
  $region13: #{single_conv_forward.1} parent=0 // pred_fallthru
    _
  // Predicated region
  $region14: #{single_conv_forward.1} parent=0 // pred_check
    _
  $region15: #{single_conv_forward.1} parent=0 // pred_check_branch
    %370 = sbr.rel (0) target = $region17
  $region16: #{single_conv_forward.1} parent=0 // pred_region
    _
  $region17: #{single_conv_forward.1} parent=0 // pred_fallthru
    _
  // Predicated region
  $region18: #{single_conv_forward.1} parent=0 // pred_check
    _
  $region19: #{single_conv_forward.1} parent=0 // pred_check_branch
    %372 = sbr.rel (0) target = $region21
  $region20: #{single_conv_forward.1} parent=0 // pred_region
    _
  $region21: #{single_conv_forward.1} parent=0 // pred_fallthru
    _
  // Predicated region
  $region22: #{single_conv_forward.1} parent=0 // pred_check
    _
  $region23: #{single_conv_forward.1} parent=0 // pred_check_branch
    %374 = sbr.rel (0) target = $region25
  $region24: #{single_conv_forward.1} parent=0 // pred_region
    _
  $region25: #{single_conv_forward.1} parent=0 // pred_fallthru
    _

</llo_original>
